<compile_context>
chip_gen: v7x
topology: tpu7x:2x2x1
jax: 0.10.0
libtpu: 0.0.40
codegen_flags: <defaults>
</compile_context>

<pallas_src>
import jax
import jax.numpy as jnp
from jax.experimental import pallas as pl
from jax.experimental.pallas import tpu as pltpu


def _round_up(a, m):
    return ((a + m - 1) // m) * m


def _sublane(dtype):
    return {4: 8, 2: 16, 1: 32}.get(jnp.dtype(dtype).itemsize, 8)


def _vmem_limit_bytes():
    """Generation-aware VMEM limit: ~0.75x physical, clamped to sane bounds."""
    cap = None
    try:
        cap = getattr(pltpu.get_tpu_info(), "vmem_capacity_bytes", None)
    except Exception:
        cap = None
    if not cap:
        cap = 64 * 2**20  # conservative fallback (v7x per-TC VMEM)
    return int(max(16 * 2**20, min(0.75 * cap, 100 * 2**20)))


def _pick_tiles(B, D, itemsize, sub, vmem_budget, block_m, block_n):
    """Pick (tm, tn). tm is VMEM-budget-sized (large for small D), tn is full
    width unless D is large and 128-divisible."""
    b_cap = _round_up(B, sub)

    if block_n is not None and (block_n == D or (D % block_n == 0 and block_n % 128 == 0)):
        tn_candidates = [block_n]
    elif D % 128 == 0 and D > 1024:
        tn_candidates = ([t for t in (512, 256, 128) if D % t == 0] or [D])
    else:
        tn_candidates = [D]

    def vmem_use(tm, tn):
        # double-buffered x / W / bias / out blocks + f32 matmul intermediate
        return 2 * (tm * D + D * tn + tn + tm * tn) * itemsize + tm * tn * 4

    tm, tn = sub, tn_candidates[-1]
    for cand_tn in tn_candidates:
        if block_m is not None:
            cand_tm = _round_up(max(block_m, sub), sub)
        else:
            cand_tm = _round_up(min(2048, b_cap), sub)
            while cand_tm > sub and vmem_use(cand_tm, cand_tn) > vmem_budget:
                cand_tm = _round_up(max(cand_tm // 2, sub), sub)
        tm, tn = cand_tm, cand_tn
        # When N is tiled, prefer tm >= tn so W (re-read once per batch tile)
        # is not streamed from HBM more often than x.
        if cand_tn == D or cand_tm >= cand_tn:
            break

    if block_m is None and pl.cdiv(B, tm) < 2 and B > 2 * sub:
        # Keep the parallel batch axis >= 2 so both v7x TensorCores get work.
        tm = _round_up(pl.cdiv(B, 2), sub)
    return tm, tn


def _resid_linear_kernel(x_ref, w_ref, b_ref, o_ref):
    # x_ref: (tm, K)   w_ref: (K, tn) pre-transposed   b_ref: (1, tn)   o_ref: (tm, tn)
    x = x_ref[...]

    # MXU matmul: LHS-last x RHS-first contraction, native dtypes, f32 accum.
    y = jnp.dot(x, w_ref[...], preferred_element_type=jnp.float32)

    K = x_ref.shape[1]
    tn = o_ref.shape[1]
    if tn == K:
        x_res = x                                   # full-width block, no slice
    else:
        j = pl.program_id(1)
        start = pl.multiple_of(j * tn, tn)
        x_res = x_ref[:, pl.ds(start, tn)]          # residual cols of this N tile

    # Epilogue in f32: bias + residual, then LeakyReLU(0.01) via maximum.
    z = y + b_ref[...].astype(jnp.float32) + x_res.astype(jnp.float32)
    o_ref[...] = jnp.maximum(z, 0.01 * z).astype(o_ref.dtype)


def resid_linear(x, w, b, *, block_m=None, block_n=None, repack_lanes=True):
    """ResidLinear forward: LeakyReLU(x @ W^T + b + x), slope 0.01.

    x: (B, D), w: (D, D) in torch (n_out, n_in) layout, b: (D,).
    """
    B, D = x.shape
    assert w.shape == (D, D), "ResidLinear requires n_in == n_out"
    assert b.shape == (D,)

    # One-time W^T (n_in, n_out): avoids any per-grid-step in-kernel transpose.
    wt = w.T

    pack = 1
    if (repack_lanes and D < 128 and 128 % D == 0
            and B % (128 // D) == 0 and block_n is None):
        # Lane-dense repack: (B, D) -> (B/pack, 128) is a free contiguous
        # reshape; W' = block-diag of `pack` copies of W^T; bias tiled.
        pack = 128 // D
        x_k = x.reshape(B // pack, pack * D)
        w_k = jnp.kron(jnp.eye(pack, dtype=wt.dtype), wt)
        b_k = jnp.tile(b, pack)
        block_n = None
    else:
        x_k, w_k, b_k = x, wt, b

    M, K = x_k.shape
    N = K

    itemsize = jnp.dtype(x.dtype).itemsize
    sub = _sublane(x.dtype)
    vmem_limit = _vmem_limit_bytes()
    tm, tn = _pick_tiles(M, K, itemsize, sub, int(0.45 * vmem_limit),
                         block_m, block_n)

    grid = (pl.cdiv(M, tm), pl.cdiv(N, tn))   # ragged boundary blocks are masked

    out = pl.pallas_call(
        _resid_linear_kernel,
        out_shape=jax.ShapeDtypeStruct((M, N), x.dtype),
        grid_spec=pltpu.PrefetchScalarGridSpec(
            num_scalar_prefetch=0,
            grid=grid,
            in_specs=[
                pl.BlockSpec((tm, K), lambda i, j: (i, 0)),   # x: tile batch, full K
                pl.BlockSpec((K, tn), lambda i, j: (0, j)),   # W^T: tile n_out cols
                pl.BlockSpec((1, tn), lambda i, j: (0, j)),   # bias
            ],
            out_specs=pl.BlockSpec((tm, tn), lambda i, j: (i, j)),
        ),
        compiler_params=pltpu.CompilerParams(
            dimension_semantics=("parallel", "parallel"),
            vmem_limit_bytes=vmem_limit),
        cost_estimate=pl.CostEstimate(
            flops=2 * M * K * N,
            transcendentals=0,
            bytes_accessed=itemsize * (2 * M * K + K * N + N)),
    )(x_k, w_k, b_k.reshape(1, N))

    return out.reshape(B, D) if pack != 1 else out


def _reference(x, w, b):
    z = x @ w.T + b + x
    return jnp.maximum(z, 0.01 * z)


def _make_case(key, B, D, dtype=jnp.float32):
    kx, kw, kb = jax.random.split(key, 3)
    x = jax.random.normal(kx, (B, D), dtype=dtype)
    # nn.Linear-style init: U(-1/sqrt(n_in), 1/sqrt(n_in))
    bound = 1.0 / jnp.sqrt(jnp.float32(D))
    w = jax.random.uniform(kw, (D, D), minval=-bound, maxval=bound, dtype=dtype)
    b = jax.random.uniform(kb, (D,), minval=-bound, maxval=bound, dtype=dtype)
    return x, w, b


if __name__ == "__main__":
    key = jax.random.PRNGKey(0)
    k1, k2, k3, k4 = jax.random.split(key, 4)

    # Case 1: the model's real hidden=32 shape -> lane-dense repack path
    # ((256,32) -> (64,128)), batch grid split into 2 parallel tiles.
    x, w, b = _make_case(k1, B=256, D=32)
    out = resid_linear(x, w, b)
    jax.block_until_ready(out)
    assert jnp.allclose(out, _reference(x, w, b), atol=1e-3, rtol=1e-3), "case1 mismatch"

    # Case 2: ragged batch under repack (B=20 -> 5 packed rows, masked boundary block).
    x, w, b = _make_case(k2, B=20, D=32)
    out = resid_linear(x, w, b)
    jax.block_until_ready(out)
    assert jnp.allclose(out, _reference(x, w, b), atol=1e-3, rtol=1e-3), "case2 mismatch"

    # Case 3: B not a multiple of the pack factor -> plain path, ragged masked block.
    x, w, b = _make_case(k3, B=10, D=32)
    out = resid_linear(x, w, b)
    jax.block_until_ready(out)
    assert jnp.allclose(out, _reference(x, w, b), atol=1e-3, rtol=1e-3), "case3 mismatch"

    # Case 4: both axes tiled (grid = (2, 2)) to exercise the N-tiled residual slice.
    x, w, b = _make_case(k4, B=64, D=256)
    out = resid_linear(x, w, b, block_m=32, block_n=128)
    jax.block_until_ready(out)
    assert jnp.allclose(out, _reference(x, w, b), atol=1e-3, rtol=1e-3), "case4 mismatch"

    print("KERNEL_OK")
</pallas_src>

<mosaic_0001>
module attributes {stable_mosaic.version = 11 : i64} {
  func.func @_resid_linear_kernel(%arg0: i32, %arg1: i32, %arg2: memref<32x128xf32, #tpu.memory_space<vmem>>, %arg3: memref<128x128xf32, #tpu.memory_space<vmem>>, %arg4: memref<1x128xf32, #tpu.memory_space<vmem>>, %arg5: memref<32x128xf32, #tpu.memory_space<vmem>>) attributes {dimension_semantics = [#tpu.dimension_semantics<parallel>, #tpu.dimension_semantics<parallel>], iteration_bounds = array<i64: 2, 1>, scalar_prefetch = 0 : i64, scratch_operands = 0 : i64, tpu.core_type = #tpu.core_type<tc>, window_params = [{transform_indices = @transform_0, window_bounds = array<i64: 32, 128>}, {transform_indices = @transform_1, window_bounds = array<i64: 128, 128>}, {transform_indices = @transform_2, window_bounds = array<i64: 1, 128>}, {transform_indices = @transform_3, window_bounds = array<i64: 32, 128>}]} {
    %c0 = arith.constant 0 : index
    %c0_0 = arith.constant 0 : index
    %0 = vector.load %arg2[%c0, %c0_0] : memref<32x128xf32, #tpu.memory_space<vmem>>, vector<32x128xf32>
    %c0_1 = arith.constant 0 : index
    %c0_2 = arith.constant 0 : index
    %1 = vector.load %arg3[%c0_1, %c0_2] : memref<128x128xf32, #tpu.memory_space<vmem>>, vector<128x128xf32>
    %cst = arith.constant dense<0.000000e+00> : vector<32x128xf32>
    %2 = tpu.matmul %0, %1, %cst {dimension_numbers = #tpu.dot_dimension_numbers<[1], [0], [0], [1], [0, 0, 1, 1], [], []>} : vector<32x128xf32>, vector<128x128xf32>, vector<32x128xf32> -> vector<32x128xf32>
    %c0_3 = arith.constant 0 : index
    %c0_4 = arith.constant 0 : index
    %3 = vector.load %arg4[%c0_3, %c0_4] : memref<1x128xf32, #tpu.memory_space<vmem>>, vector<1x128xf32>
    %4 = vector.broadcast %3 : vector<1x128xf32> to vector<32x128xf32>
    %5 = arith.addf %2, %4 : vector<32x128xf32>
    %6 = arith.addf %5, %0 : vector<32x128xf32>
    %cst_5 = arith.constant 0.00999999977 : f32
    %7 = vector.broadcast %cst_5 : f32 to vector<32x128xf32>
    %8 = arith.mulf %7, %6 : vector<32x128xf32>
    %9 = arith.maximumf %6, %8 : vector<32x128xf32>
    %c0_6 = arith.constant 0 : index
    %c0_7 = arith.constant 0 : index
    %10 = vector.load %arg5[%c0_6, %c0_7] : memref<32x128xf32, #tpu.memory_space<vmem>>, vector<32x128xf32>
    tpu.vector_store %arg5[%c0_6, %c0_7], %9 {strides = array<i32>} : memref<32x128xf32, #tpu.memory_space<vmem>>, vector<32x128xf32>,
    return
  }
  func.func @transform_0(%arg0: i32, %arg1: i32) -> (i32, i32) {
    %c0_i32 = arith.constant 0 : i32
    %c0_i32_0 = arith.constant 0 : i32
    return %arg0, %c0_i32 : i32, i32
  }
  func.func @transform_1(%arg0: i32, %arg1: i32) -> (i32, i32) {
    %c0_i32 = arith.constant 0 : i32
    %c0_i32_0 = arith.constant 0 : i32
    return %c0_i32, %arg1 : i32, i32
  }
  func.func @transform_2(%arg0: i32, %arg1: i32) -> (i32, i32) {
    %c0_i32 = arith.constant 0 : i32
    %c0_i32_0 = arith.constant 0 : i32
    return %c0_i32, %arg1 : i32, i32
  }
  func.func @transform_3(%arg0: i32, %arg1: i32) -> (i32, i32) {
    %c0_i32 = arith.constant 0 : i32
    return %arg0, %arg1 : i32, i32
  }
}

</mosaic_0001>

<llo_original>
// kernel: tpu_custom_call.1
$region0: #{tpu_custom_call.1}
  #allocation0 [shape = 'u32[]', space=smem, size = 0x4, offset = 0x4, fixed_abs, tag = 'smem constant byte address 0x4 - core index']
  #allocation1 [shape = 'u32[144,128]{1,0:T(1,128)}', space=vmem, size = 0x12000, scoped, tag = 'internal scratch']
  %s0 = inlined_call_operand.hbm [shape: f32[64,128], index: 0, kind: input, shape index: {}]
  %s1 = inlined_call_operand.hbm [shape: f32[128,128], index: 1, kind: input, shape index: {}]
  %s2 = inlined_call_operand.vmem [shape: f32[1,128], index: 2, kind: input, shape index: {}]
  %s3 = inlined_call_operand.hbm [shape: f32[64,128], index: 3, kind: output, shape index: {}]
  %s4 = sld [smem:[#allocation0]]
  $region53: #{tpu_custom_call.1} parent=0
    _
  %s6 = ssub.s32 1, %s4
  %s7 = scalar_select 0, %s6, %s4
  $region1: #{tpu_custom_call.1} parent=0
    #allocation2 [shape = 'u8[32768]{0}', space=vmem, size = 0x8000, scoped, tag = 'input window, operand 0']
    #allocation3 [shape = 's32[2]{0}', space=sflag, size = 0x8, scoped, tag = 'scoped memory for tpu_custom_call.1']
    #allocation4 [shape = 's32[2]{0}', space=sflag, size = 0x8, scoped, tag = 'scoped memory for tpu_custom_call.1']
    #allocation5 [shape = 'u8[65536]{0}', space=vmem, size = 0x10000, scoped, tag = 'input window, operand 1, single buffered']
    #allocation6 [shape = 's32[1]{0}', space=sflag, size = 0x4, scoped, tag = 'scoped memory for tpu_custom_call.1']
    #allocation7 [shape = 'u8[32768]{0}', space=vmem, size = 0x8000, scoped, tag = 'output window, operand 0']
    %8 = vsyncpa [#allocation3], 0
    %s9 = scalar_lea.sflag [#allocation3], 1
    %10 = vsyncpa %s9, 0
    %11 = vsyncpa [#allocation6], 0
    %12 = vsyncpa [#allocation4], 0
    %s13 = scalar_lea.sflag [#allocation4], 1
    %14 = vsyncpa %s13, 0
    loop: start=0, step=1, limit=4
    $region2: #{tpu_custom_call.1} parent=1 // loop_pre_header
      _
    $region3: #{tpu_custom_call.1} parent=1 // loop_header
      %s16 = sphi 0, %s20
      %p17 = scmp.ge.s32.totalorder %s16, 4
      %s23 = sphi 0, %s35
      %s24 = sphi 0, %s31
      %s25 = sphi 0, %s23
      %s26 = sphi 0, %s24
      %s27 = sphi 0, %s25
      %s28 = sphi 0, %s26
      %s38 = sphi 0, %s40
      %s41 = sphi 0, %s38
      %s42 = sphi 0, %s41
      %s58 = sphi 0, %s42
      %s64 = sphi 0, %s66
      %s67 = sphi 0, %s64
      %s68 = sphi 0, %s67
      %s84 = sphi 0, %s68
      %s90 = sphi 0, %s92
      %s93 = sphi 0, %s90
      %s94 = sphi 0, %s93
      %s110 = sphi 0, %s94
      %s118 = sphi 0, %s120
      %s121 = sphi 0, %s118
      %s122 = sphi 0, %s121
      %s138 = sphi 0, %s122
    $region4: #{tpu_custom_call.1} parent=1 // loop_header_branch
      %19 = sbr.rel (%p17) target = $region8
    $region5: #{tpu_custom_call.1} parent=1 // loop_body
      %s21 = ssub.s32 %s16, 1
      %s22 = ssub.s32 %s16, 2
      %s29 = sadd.s32 1, %s24
      %p30 = scmp.ge.s32.totalorder %s29, 1
      %s31 = scalar_select %p30, 0, %s29
      %s32 = sadd.s32 1, %s23
      %s33 = scalar_select %p30, %s32, %s23
      %p34 = scmp.ge.s32.totalorder %s33, 2
      %s35 = scalar_select %p34, 0, %s33
      %s36 = ssub.s32 %s23, %s35
      %p37 = scmp.eq.s32.totalorder %s36, 0
      %s39 = sadd.s32 %s38, 1
      %s40 = scalar_select %p37, %s38, %s39
      %p43 = pneg %p37
      %p44 = scmp.eq.s32.totalorder %s16, 1
      %p45 = por %p43, %p44
      %p46 = scmp.ne.s32.totalorder %s38, %s41
      %p47 = scmp.eq.s32.totalorder %s16, 0
      %p48 = por %p46, %p47
      %p49 = scmp.ne.s32.totalorder %s38, %s41
      %p50 = scmp.eq.s32.totalorder %s21, 1
      %p51 = por %p49, %p50
      %p52 = scmp.ne.s32.totalorder %s41, %s42
      %p53 = scmp.eq.s32.totalorder %s21, 0
      %p54 = por %p52, %p53
      %p55 = scmp.ne.s32.totalorder %s41, %s42
      %p56 = scmp.eq.s32.totalorder %s22, 1
      %p57 = por %p55, %p56
      %p59 = scmp.ne.s32.totalorder %s42, %s58
      %p60 = scmp.eq.s32.totalorder %s22, 0
      %p61 = por %p59, %p60
      %s62 = ssub.s32 %s24, %s31
      %p63 = scmp.eq.s32.totalorder %s62, 0
      %s65 = sadd.s32 %s64, 1
      %s66 = scalar_select %p63, %s64, %s65
      %p69 = pneg %p63
      %p70 = scmp.eq.s32.totalorder %s16, 1
      %p71 = por %p69, %p70
      %p72 = scmp.ne.s32.totalorder %s64, %s67
      %p73 = scmp.eq.s32.totalorder %s16, 0
      %p74 = por %p72, %p73
      %p75 = scmp.ne.s32.totalorder %s64, %s67
      %p76 = scmp.eq.s32.totalorder %s21, 1
      %p77 = por %p75, %p76
      %p78 = scmp.ne.s32.totalorder %s67, %s68
      %p79 = scmp.eq.s32.totalorder %s21, 0
      %p80 = por %p78, %p79
      %p81 = scmp.ne.s32.totalorder %s67, %s68
      %p82 = scmp.eq.s32.totalorder %s22, 1
      %p83 = por %p81, %p82
      %p85 = scmp.ne.s32.totalorder %s68, %s84
      %p86 = scmp.eq.s32.totalorder %s22, 0
      %p87 = por %p85, %p86
      %s88 = ssub.s32 %s24, %s31
      %p89 = scmp.eq.s32.totalorder %s88, 0
      %s91 = sadd.s32 %s90, 1
      %s92 = scalar_select %p89, %s90, %s91
      %p95 = pneg %p89
      %p96 = scmp.eq.s32.totalorder %s16, 1
      %p97 = por %p95, %p96
      %p98 = scmp.ne.s32.totalorder %s90, %s93
      %p99 = scmp.eq.s32.totalorder %s16, 0
      %p100 = por %p98, %p99
      %p101 = scmp.ne.s32.totalorder %s90, %s93
      %p102 = scmp.eq.s32.totalorder %s21, 1
      %p103 = por %p101, %p102
      %p104 = scmp.ne.s32.totalorder %s93, %s94
      %p105 = scmp.eq.s32.totalorder %s21, 0
      %p106 = por %p104, %p105
      %p107 = scmp.ne.s32.totalorder %s93, %s94
      %p108 = scmp.eq.s32.totalorder %s22, 1
      %p109 = por %p107, %p108
      %p111 = scmp.ne.s32.totalorder %s94, %s110
      %p112 = scmp.eq.s32.totalorder %s22, 0
      %p113 = por %p111, %p112
      %s114 = ssub.s32 %s23, %s35
      %s115 = ssub.s32 %s24, %s31
      %s116 = sor.u32 %s114, %s115
      %p117 = scmp.eq.s32.totalorder %s116, 0
      %s119 = sadd.s32 %s118, 1
      %s120 = scalar_select %p117, %s118, %s119
      %p123 = pneg %p117
      %p124 = scmp.eq.s32.totalorder %s16, 1
      %p125 = por %p123, %p124
      %p126 = scmp.ne.s32.totalorder %s118, %s121
      %p127 = scmp.eq.s32.totalorder %s16, 0
      %p128 = por %p126, %p127
      %p129 = scmp.ne.s32.totalorder %s118, %s121
      %p130 = scmp.eq.s32.totalorder %s21, 1
      %p131 = por %p129, %p130
      %p132 = scmp.ne.s32.totalorder %s121, %s122
      %p133 = scmp.eq.s32.totalorder %s21, 0
      %p134 = por %p132, %p133
      %p135 = scmp.ne.s32.totalorder %s121, %s122
      %p136 = scmp.eq.s32.totalorder %s22, 1
      %p137 = por %p135, %p136
      %p139 = scmp.ne.s32.totalorder %s122, %s138
      %p140 = scmp.eq.s32.totalorder %s22, 0
      %p141 = por %p139, %p140
      %p142 = scmp.le.s32.totalorder 1, %s16
      %p143 = scmp.lt.s32.totalorder %s16, 3
      %p144 = pnand %p142, %p143
      %p145 = pneg %p144
      // Predicated region
      $region9: #{tpu_custom_call.1} parent=5 // pred_check
        _
      $region10: #{tpu_custom_call.1} parent=5 // pred_check_branch
        %147 = sbr.rel (%p144) target = $region12
      $region11: #{tpu_custom_call.1} parent=5 // pred_region
        %s148 = ssub.s32 %s16, 1
        // Predicated region
        $region13: #{tpu_custom_call.1} parent=11 // pred_check
          %p149 = pneg %p80
        $region14: #{tpu_custom_call.1} parent=11 // pred_check_branch
          %151 = sbr.rel (%p149) target = $region16
        $region15: #{tpu_custom_call.1} parent=11 // pred_region
          %s153 = ssub.s32 2048, 2048
          %154 = vsyncadd [#allocation6], %s153
          %s155 = smul.addr %s26, 128
          %s156 = scalar_lea.hbm %s1, %s155
          %s157 = sshll.u32 [#allocation5], 4
          %s158 = int_to_ptr.vmem [resolvable:$true] %s157
          %163 = dma.hbm_to_vmem [thread:$0]  %s156, 2048, %s158, [#allocation6], 128, 128, 8
        $region16: #{tpu_custom_call.1} parent=11 // pred_fallthru
          _
        // Predicated region
        $region17: #{tpu_custom_call.1} parent=11 // pred_check
          %p164 = pneg %p106
        $region18: #{tpu_custom_call.1} parent=11 // pred_check_branch
          %166 = sbr.rel (%p164) target = $region20
        $region19: #{tpu_custom_call.1} parent=11 // pred_region
          %p167 = scmp.lt.s32.totalorder %s26, 0
          %s168 = scalar_select %p167, %s26, 0
          %s169 = scalar_lea.vmem %s2, %s168
        $region20: #{tpu_custom_call.1} parent=11 // pred_fallthru
          _
      $region12: #{tpu_custom_call.1} parent=5 // pred_fallthru
        _
      %p170 = scmp.lt.s32.totalorder %s16, 2
      // Predicated region
      $region21: #{tpu_custom_call.1} parent=5 // pred_check
        %p171 = pneg %p170
      $region22: #{tpu_custom_call.1} parent=5 // pred_check_branch
        %173 = sbr.rel (%p171) target = $region24
      $region23: #{tpu_custom_call.1} parent=5 // pred_region
        // Predicated region
        $region25: #{tpu_custom_call.1} parent=23 // pred_check
          %p174 = pneg %p48
        $region26: #{tpu_custom_call.1} parent=23 // pred_check_branch
          %176 = sbr.rel (%p174) target = $region28
        $region27: #{tpu_custom_call.1} parent=23 // pred_region
          %s177 = sand.u32 %s38, 1
          %s178 = scalar_lea.sflag [#allocation3], %s177
          %s179 = sand.u32 %s38, 1
          %s180 = smul.addr %s179, 32
          %s181 = scalar_lea.vmem [#allocation2], %s180
          %s182 = smul.u32 4, %s23
          %s184 = ssub.s32 512, 512
          %185 = vsyncadd %s178, %s184
          %s186 = smul.addr %s182, 128
          %s187 = scalar_lea.hbm %s0, %s186
          %s188 = sshll.u32 %s181, 4
          %s189 = int_to_ptr.vmem [resolvable:$true] %s188
          %194 = dma.hbm_to_vmem [thread:$0]  %s187, 512, %s189, %s178, 128, 128, 8
        $region28: #{tpu_custom_call.1} parent=23 // pred_fallthru
          _
      $region24: #{tpu_custom_call.1} parent=5 // pred_fallthru
        _
      %p195 = scmp.le.s32.totalorder 1, %s16
      %p196 = scmp.lt.s32.totalorder %s16, 3
      %p197 = pnand %p195, %p196
      %p198 = pneg %p197
      // Predicated region
      $region29: #{tpu_custom_call.1} parent=5 // pred_check
        _
      $region30: #{tpu_custom_call.1} parent=5 // pred_check_branch
        %200 = sbr.rel (%p197) target = $region32
      $region31: #{tpu_custom_call.1} parent=5 // pred_region
        %s201 = ssub.s32 %s16, 1
        %s202 = sand.u32 %s41, 1
        %s203 = scalar_lea.sflag [#allocation3], %s202
        %s204 = sand.u32 %s41, 1
        %s205 = smul.addr %s204, 32
        %s206 = scalar_lea.vmem [#allocation2], %s205
        // Predicated region
        $region33: #{tpu_custom_call.1} parent=31 // pred_check
          %p207 = pneg %p54
        $region34: #{tpu_custom_call.1} parent=31 // pred_check_branch
          %209 = sbr.rel (%p207) target = $region36
        $region35: #{tpu_custom_call.1} parent=31 // pred_region
          %210 = dma.done %s203, 512
        $region36: #{tpu_custom_call.1} parent=31 // pred_fallthru
          _
        // Predicated region
        $region37: #{tpu_custom_call.1} parent=31 // pred_check
          %p211 = pneg %p80
        $region38: #{tpu_custom_call.1} parent=31 // pred_check_branch
          %213 = sbr.rel (%p211) target = $region40
        $region39: #{tpu_custom_call.1} parent=31 // pred_region
          %214 = dma.done [#allocation6], 2048
        $region40: #{tpu_custom_call.1} parent=31 // pred_fallthru
          _
        %s215 = sand.u32 %s41, 1
        %s216 = scalar_lea.sflag [#allocation3], %s215
        %s217 = sand.u32 %s41, 1
        %s218 = smul.addr %s217, 32
        %s219 = scalar_lea.vmem [#allocation2], %s218
        %p220 = pneg %p54
        %p221 = pneg %p51
        %p222 = pneg %p80
        %p223 = pneg %p77
        %p224 = scmp.lt.s32.totalorder %s26, 0
        %s225 = scalar_select %p224, %s26, 0
        %s226 = scalar_lea.vmem %s2, %s225
        %p227 = pneg %p106
        %p228 = pneg %p103
        %p229 = pneg %p134
        %p230 = pneg %p131
        %s231 = sand.u32 %s121, 1
        %s232 = scalar_lea.sflag [#allocation4], %s231
        %s233 = sand.u32 %s121, 1
        %s234 = smul.addr %s233, 32
        %s235 = scalar_lea.vmem [#allocation7], %s234
        %s236 = smul.u32 4, %s25
        %p237 = scmp.lt.s32.totalorder %s26, 0
        %s238 = scalar_select %p237, %s26, 0
        %s239 = scalar_lea.vmem %s2, %s238
        %s240 = smul.u32 4, %s25
        %v241 = vld [vmem:[%s206] sm:$0xff]
        %v242 = vld [vmem:[%s206 + $0x8] sm:$0xff]
        %v243 = vld [vmem:[%s206 + $0x10] sm:$0xff]
        %v244 = vld [vmem:[%s206 + $0x18] sm:$0xff]
        %v245 = vld [vmem:[#allocation5] sm:$0xff]
        %v246 = vld [vmem:[#allocation5 + $0x8] sm:$0xff]
        %v247 = vld [vmem:[#allocation5 + $0x10] sm:$0xff]
        %v248 = vld [vmem:[#allocation5 + $0x18] sm:$0xff]
        %v249 = vld [vmem:[#allocation5 + $0x20] sm:$0xff]
        %v250 = vld [vmem:[#allocation5 + $0x28] sm:$0xff]
        %v251 = vld [vmem:[#allocation5 + $0x30] sm:$0xff]
        %v252 = vld [vmem:[#allocation5 + $0x38] sm:$0xff]
        %v253 = vld [vmem:[#allocation5 + $0x40] sm:$0xff]
        %v254 = vld [vmem:[#allocation5 + $0x48] sm:$0xff]
        %v255 = vld [vmem:[#allocation5 + $0x50] sm:$0xff]
        %v256 = vld [vmem:[#allocation5 + $0x58] sm:$0xff]
        %v257 = vld [vmem:[#allocation5 + $0x60] sm:$0xff]
        %v258 = vld [vmem:[#allocation5 + $0x68] sm:$0xff]
        %v259 = vld [vmem:[#allocation5 + $0x70] sm:$0xff]
        %v260 = vld [vmem:[#allocation5 + $0x78] sm:$0xff]
        %v261 = vld [vmem:[%s239] sm:$0x1]
        %v263 = vlaneseq
        %v264 = vshrl.u32 %v263, 7
        %v265 = vsub.s32 0, %v264
        %v266 = vrot.slane %v261, %v265
        %268 = vmatprep.subr.mxu0 0.0
        %269 = vmatpush1.msra.mxu0 %v245
        %270 = vmatprep.subr.mxu0 0.0
        %271 = vmatpush1.msra.mxu0 %v246
        %272 = vmatprep.subr.mxu0 0.0
        %273 = vmatpush1.msra.mxu0 %v247
        %274 = vmatprep.subr.mxu0 0.0
        %275 = vmatpush1.msra.mxu0 %v248
        %276 = vmatprep.subr.mxu0 0.0
        %277 = vmatpush1.msra.mxu0 %v249
        %278 = vmatprep.subr.mxu0 0.0
        %279 = vmatpush1.msra.mxu0 %v250
        %280 = vmatprep.subr.mxu0 0.0
        %281 = vmatpush1.msra.mxu0 %v251
        %282 = vmatprep.subr.mxu0 0.0
        %283 = vmatpush1.msra.mxu0 %v252
        %284 = vmatprep.subr.mxu0 0.0
        %285 = vmatpush1.msra.mxu0 %v253
        %286 = vmatprep.subr.mxu0 0.0
        %287 = vmatpush1.msra.mxu0 %v254
        %288 = vmatprep.subr.mxu0 0.0
        %289 = vmatpush1.msra.mxu0 %v255
        %290 = vmatprep.subr.mxu0 0.0
        %291 = vmatpush1.msra.mxu0 %v256
        %292 = vmatprep.subr.mxu0 0.0
        %293 = vmatpush1.msra.mxu0 %v257
        %294 = vmatprep.subr.mxu0 0.0
        %295 = vmatpush1.msra.mxu0 %v258
        %296 = vmatprep.subr.mxu0 0.0
        %297 = vmatpush1.msra.mxu0 %v259
        %298 = vmatprep.subr.mxu0 0.0
        %299 = vmatpush1.msra.mxu0 %v260
        %300 = vmatprep.subr.mxu0 0.0
        %301 = vmatpush1.msra.mxu0 0.0
        %302 = vmatprep.subr.mxu0 0.0
        %303 = vmatpush1.msra.mxu0 0.0
        %304 = vmatprep.subr.mxu0 0.0
        %305 = vmatpush1.msra.mxu0 0.0
        %306 = vmatprep.subr.mxu0 0.0
        %307 = vmatpush1.msra.mxu0 0.0
        %308 = vmatprep.subr.mxu0 0.0
        %309 = vmatpush1.msra.mxu0 0.0
        %310 = vmatprep.subr.mxu0 0.0
        %311 = vmatpush1.msra.mxu0 0.0
        %312 = vmatprep.subr.mxu0 0.0
        %313 = vmatpush1.msra.mxu0 0.0
        %314 = vmatprep.subr.mxu0 0.0
        %315 = vmatpush1.msra.mxu0 0.0
        %316 = vmatprep.subr.mxu0 0.0
        %317 = vmatpush1.msra.mxu0 0.0
        %318 = vmatprep.subr.mxu0 0.0
        %319 = vmatpush1.msra.mxu0 0.0
        %320 = vmatprep.subr.mxu0 0.0
        %321 = vmatpush1.msra.mxu0 0.0
        %322 = vmatprep.subr.mxu0 0.0
        %323 = vmatpush1.msra.mxu0 0.0
        %324 = vmatprep.subr.mxu0 0.0
        %325 = vmatpush1.msra.mxu0 0.0
        %326 = vmatprep.subr.mxu0 0.0
        %327 = vmatpush1.msra.mxu0 0.0
        %328 = vmatprep.subr.mxu0 0.0
        %329 = vmatpush1.msra.mxu0 0.0
        %330 = vmatprep.subr.mxu0 0.0
        %331 = vmatpush1.msra.mxu0 0.0
        %332 = vmatprep.mubr.f32.mxu0 0.0
        %333 = vmatmul.mubr.f32.gmra.mrb[0].mxu0 %v241
        %v334 = vpop.f32.mrb[0].mxu0
        %v335 = vadd.f32 %v266, %v334
        %v336 = vpop.f32.mrb[0].mxu0
        %337 = vmatprep.mubr.f32.mxu0 0.0
        %338 = vmatmul.mubr.f32.gmra.mrb[0].mxu0 %v242
        %v339 = vpop.f32.mrb[0].mxu0
        %v340 = vadd.f32 %v266, %v339
        %v341 = vpop.f32.mrb[0].mxu0
        %342 = vmatprep.mubr.f32.mxu0 0.0
        %343 = vmatmul.mubr.f32.gmra.mrb[0].mxu0 %v243
        %v344 = vpop.f32.mrb[0].mxu0
        %v345 = vadd.f32 %v266, %v344
        %v346 = vpop.f32.mrb[0].mxu0
        %347 = vmatprep.mubr.f32.mxu0 0.0
        %348 = vmatmul.mubr.f32.gmra.mrb[0].mxu0 %v244
        %v349 = vpop.f32.mrb[0].mxu0
        %v350 = vadd.f32 %v266, %v349
        %v351 = vpop.f32.mrb[0].mxu0
        %352 = vdwg.mxu0
        %v353 = vadd.f32 %v335, %v241
        %v354 = vadd.f32 %v340, %v242
        %v355 = vadd.f32 %v345, %v243
        %v356 = vadd.f32 %v350, %v244
        %v357 = vmul.f32 %v353, 0.01
        %v358 = vmul.f32 %v354, 0.01
        %v359 = vmul.f32 %v355, 0.01
        %v360 = vmul.f32 %v356, 0.01
        %v361 = vmax.f32 %v353, %v357
        %v362 = vmax.f32 %v354, %v358
        %v363 = vmax.f32 %v355, %v359
        %v364 = vmax.f32 %v356, %v360
        %365 = vst [vmem:[%s235] sm:$0xff] %v361
        %366 = vst [vmem:[%s235 + $0x8] sm:$0xff] %v362
        %367 = vst [vmem:[%s235 + $0x10] sm:$0xff] %v363
        %368 = vst [vmem:[%s235 + $0x18] sm:$0xff] %v364
        %s369 = sand.u32 %s121, 1
        %s370 = scalar_lea.sflag [#allocation4], %s369
        %s371 = sand.u32 %s121, 1
        %s372 = smul.addr %s371, 32
        %s373 = scalar_lea.vmem [#allocation7], %s372
        // Predicated region
        $region41: #{tpu_custom_call.1} parent=31 // pred_check
          %p374 = pneg %p131
        $region42: #{tpu_custom_call.1} parent=31 // pred_check_branch
          %376 = sbr.rel (%p374) target = $region44
        $region43: #{tpu_custom_call.1} parent=31 // pred_region
          %s377 = smul.u32 4, %s25
          %s379 = ssub.s32 512, 512
          %380 = vsyncadd %s370, %s379
          %s381 = sadd.s32 %s26, %s377
          %s382 = smul.addr %s381, 128
          %s383 = scalar_lea.hbm %s3, %s382
          %s384 = sshll.u32 %s373, 4
          %s385 = int_to_ptr.vmem [resolvable:$true] %s384
          %390 = dma.vmem_to_hbm [thread:$0]  %s385, 512, %s383, %s370, 128, 128, 8
        $region44: #{tpu_custom_call.1} parent=31 // pred_fallthru
          _
      $region32: #{tpu_custom_call.1} parent=5 // pred_fallthru
        _
      %p391 = scmp.le.s32.totalorder 2, %s16
      // Predicated region
      $region45: #{tpu_custom_call.1} parent=5 // pred_check
        %p392 = pneg %p391
      $region46: #{tpu_custom_call.1} parent=5 // pred_check_branch
        %394 = sbr.rel (%p392) target = $region48
      $region47: #{tpu_custom_call.1} parent=5 // pred_region
        %s395 = ssub.s32 %s16, 2
        // Predicated region
        $region49: #{tpu_custom_call.1} parent=47 // pred_check
          %p396 = pneg %p137
        $region50: #{tpu_custom_call.1} parent=47 // pred_check_branch
          %398 = sbr.rel (%p396) target = $region52
        $region51: #{tpu_custom_call.1} parent=47 // pred_region
          %s399 = sand.u32 %s122, 1
          %s400 = scalar_lea.sflag [#allocation4], %s399
          %s401 = sand.u32 %s122, 1
          %s402 = smul.addr %s401, 32
          %s403 = scalar_lea.vmem [#allocation7], %s402
          %404 = dma.done %s400, 512
        $region52: #{tpu_custom_call.1} parent=47 // pred_fallthru
          _
      $region48: #{tpu_custom_call.1} parent=5 // pred_fallthru
        _
    $region6: #{tpu_custom_call.1} parent=1 // loop_footer
      %s20 = sadd.s32 1, %s16
    $region7: #{tpu_custom_call.1} parent=1 // loop_footer_branch
      %15 = sbr.rel target = $region3
    $region8: #{tpu_custom_call.1} parent=1 // loop_exit
      _
    %405 = vsyncpa [#allocation3], 1
    %s406 = scalar_lea.sflag [#allocation3], 1
    %407 = vsyncpa %s406, 1
    %408 = vsyncpa [#allocation6], 1
    %409 = vsyncpa [#allocation4], 1
    %s410 = scalar_lea.sflag [#allocation4], 1
    %411 = vsyncpa %s410, 1

</llo_original>
